<compile_context>
chip_gen: v7x
topology: tpu7x:2x2x1
jax: 0.10.0
libtpu: 0.0.40
codegen_flags: <defaults>
</compile_context>

<pallas_src>
import jax
import jax.numpy as jnp
from jax.experimental import pallas as pl
from jax.experimental.pallas import tpu as pltpu


def _ce_kernel(logits_ref, labels_ref, losses_ref):
    x = logits_ref[...].astype(jnp.float32)          # (tn, C)
    y = labels_ref[...].astype(jnp.float32)          # (tn, C)

    # Numerically stable logsumexp along the class (lane) axis.
    m = jnp.max(x, axis=1, keepdims=True)                                  # (tn, 1)
    lse = m + jnp.log(jnp.sum(jnp.exp(x - m), axis=1, keepdims=True))      # (tn, 1)

    # Fused soft-label cross entropy (no normalization assumption on labels):
    #   -sum((x - lse) * y) = sum(y) * lse - sum(x * y)
    losses_ref[...] = (jnp.sum(y, axis=1, keepdims=True) * lse
                       - jnp.sum(x * y, axis=1, keepdims=True))            # (tn, 1)


def _vmem_capacity_bytes():
    try:
        info = pltpu.get_tpu_info()
        cap = getattr(info, "vmem_capacity_bytes", None)
        if cap:
            return int(cap)
    except Exception:
        pass
    return 64 * 1024 * 1024  # conservative (v7x per-TC VMEM)


def _pick_block_rows(n, c, itemsize_logits, itemsize_labels, vmem_cap):
    # Sublane multiple required by the narrowest dtype: 8 (f32), 16 (bf16), 32 (i8).
    sublane = max(8, 32 // max(1, min(itemsize_logits, itemsize_labels)))
    # Double-buffered pair of input blocks should fit in ~1/3 of VMEM capacity.
    per_pair_budget = max(vmem_cap // 6, 2 << 20)
    bytes_per_row = c * (itemsize_logits + itemsize_labels)
    tn = per_pair_budget // max(1, bytes_per_row)
    tn = max(sublane, min(1024, (tn // sublane) * sublane))
    # Never tile wider than the (sublane-rounded) number of rows.
    n_rounded = ((n + sublane - 1) // sublane) * sublane
    return min(tn, n_rounded)


def scattered_cross_entropy_loss(logits, labels, reduction="mean"):
    """Pallas TPU soft-label cross entropy. logits/labels: (N, C)."""
    N, C = logits.shape
    assert labels.shape == (N, C), (
        f"label tensor shape is {labels.shape}, while logits tensor shape is {logits.shape}"
    )
    assert reduction in ("none", "mean", "sum")

    it_l = jnp.dtype(logits.dtype).itemsize
    it_y = jnp.dtype(labels.dtype).itemsize
    vmem_cap = _vmem_capacity_bytes()
    tn = _pick_block_rows(N, C, it_l, it_y, vmem_cap)

    # Pad rows up to a multiple of the tile. Zero padding is exact here:
    # padded rows have sum(y) = 0 and sum(x*y) = 0  =>  loss contribution is exactly 0.
    Np = ((N + tn - 1) // tn) * tn
    if Np != N:
        logits = jnp.pad(logits, ((0, Np - N), (0, 0)))
        labels = jnp.pad(labels, ((0, Np - N), (0, 0)))

    block_bytes = tn * C * (it_l + it_y)
    vmem_limit = int(min(vmem_cap * 3 // 4, max(32 * 1024 * 1024, 3 * block_bytes)))

    losses = pl.pallas_call(
        _ce_kernel,
        out_shape=jax.ShapeDtypeStruct((Np, 1), jnp.float32),
        grid_spec=pltpu.PrefetchScalarGridSpec(
            num_scalar_prefetch=0,
            grid=(Np // tn,),
            in_specs=[
                pl.BlockSpec((tn, C), lambda i: (i, 0)),
                pl.BlockSpec((tn, C), lambda i: (i, 0)),
            ],
            out_specs=pl.BlockSpec((tn, 1), lambda i: (i, 0)),
        ),
        compiler_params=pltpu.CompilerParams(
            dimension_semantics=("parallel",),   # independent row tiles -> megacore-shardable
            vmem_limit_bytes=vmem_limit,
        ),
    )(logits, labels)

    if reduction == "none":
        return losses[:N, 0]
    total = jnp.sum(losses)          # padded rows contribute exactly 0
    if reduction == "mean":
        return total / N
    return total


def _reference(logits, labels, reduction="mean"):
    x = logits.astype(jnp.float32)
    y = labels.astype(jnp.float32)
    log_probs = jax.nn.log_softmax(x, axis=1)
    losses = -jnp.sum(log_probs * y, axis=1)
    if reduction == "none":
        return losses
    if reduction == "mean":
        return jnp.sum(losses) / logits.shape[0]
    return jnp.sum(losses)


if __name__ == "__main__":
    key = jax.random.PRNGKey(0)

    # (N, C, dtype): small shapes; second case exercises row padding, non-128 C and
    # native bf16 streaming.
    cases = [
        (16, 32, jnp.float32),
        (10, 48, jnp.bfloat16),
    ]

    ok = True
    for idx, (N, C, dtype) in enumerate(cases):
        k1, k2 = jax.random.split(jax.random.fold_in(key, idx))
        logits = jax.random.normal(k1, (N, C), dtype=jnp.float32).astype(dtype)
        labels = jax.nn.softmax(
            jax.random.normal(k2, (N, C), dtype=jnp.float32), axis=1
        ).astype(dtype)

        tol = 1e-5 if dtype == jnp.float32 else 1e-4
        for reduction in ("mean", "sum", "none"):
            out = jax.block_until_ready(
                scattered_cross_entropy_loss(logits, labels, reduction=reduction)
            )
            ref = _reference(logits, labels, reduction=reduction)
            if not jnp.allclose(out, ref, atol=tol, rtol=tol):
                ok = False

    if ok:
        print("KERNEL_OK")
</pallas_src>

<mosaic_0001>
module attributes {stable_mosaic.version = 11 : i64} {
  func.func @_ce_kernel(%arg0: i32, %arg1: memref<16x32xf32, #tpu.memory_space<vmem>>, %arg2: memref<16x32xf32, #tpu.memory_space<vmem>>, %arg3: memref<16x1xf32, #tpu.memory_space<vmem>>) attributes {dimension_semantics = [#tpu.dimension_semantics<parallel>], iteration_bounds = array<i64: 1>, scalar_prefetch = 0 : i64, scratch_operands = 0 : i64, tpu.core_type = #tpu.core_type<tc>, window_params = [{transform_indices = @transform_0, window_bounds = array<i64: 16, 32>}, {transform_indices = @transform_1, window_bounds = array<i64: 16, 32>}, {transform_indices = @transform_2, window_bounds = array<i64: 16, 1>}]} {
    %c0 = arith.constant 0 : index
    %c0_0 = arith.constant 0 : index
    %0 = vector.load %arg1[%c0, %c0_0] : memref<16x32xf32, #tpu.memory_space<vmem>>, vector<16x32xf32>
    %c0_1 = arith.constant 0 : index
    %c0_2 = arith.constant 0 : index
    %1 = vector.load %arg2[%c0_1, %c0_2] : memref<16x32xf32, #tpu.memory_space<vmem>>, vector<16x32xf32>
    %cst = arith.constant dense<0xFF800000> : vector<16xf32>
    %2 = vector.multi_reduction <maximumf>, %0, %cst [1] : vector<16x32xf32> to vector<16xf32>
    %3 = vector.shape_cast %2 : vector<16xf32> to vector<16x1xf32>
    %4 = vector.broadcast %3 : vector<16x1xf32> to vector<16x32xf32>
    %5 = arith.subf %0, %4 : vector<16x32xf32>
    %6 = math.exp %5 : vector<16x32xf32>
    %cst_3 = arith.constant dense<0.000000e+00> : vector<16xf32>
    %7 = vector.multi_reduction <add>, %6, %cst_3 [1] : vector<16x32xf32> to vector<16xf32>
    %8 = vector.shape_cast %7 : vector<16xf32> to vector<16x1xf32>
    %9 = math.log %8 : vector<16x1xf32>
    %10 = arith.addf %3, %9 : vector<16x1xf32>
    %cst_4 = arith.constant dense<0.000000e+00> : vector<16xf32>
    %11 = vector.multi_reduction <add>, %1, %cst_4 [1] : vector<16x32xf32> to vector<16xf32>
    %12 = vector.shape_cast %11 : vector<16xf32> to vector<16x1xf32>
    %13 = arith.mulf %12, %10 : vector<16x1xf32>
    %14 = arith.mulf %0, %1 : vector<16x32xf32>
    %cst_5 = arith.constant dense<0.000000e+00> : vector<16xf32>
    %15 = vector.multi_reduction <add>, %14, %cst_5 [1] : vector<16x32xf32> to vector<16xf32>
    %16 = vector.shape_cast %15 : vector<16xf32> to vector<16x1xf32>
    %17 = arith.subf %13, %16 : vector<16x1xf32>
    %c0_6 = arith.constant 0 : index
    %c0_7 = arith.constant 0 : index
    %18 = vector.load %arg3[%c0_6, %c0_7] : memref<16x1xf32, #tpu.memory_space<vmem>>, vector<16x1xf32>
    tpu.vector_store %arg3[%c0_6, %c0_7], %17 {strides = array<i32>} : memref<16x1xf32, #tpu.memory_space<vmem>>, vector<16x1xf32>,
    return
  }
  func.func @transform_0(%arg0: i32) -> (i32, i32) {
    %c0_i32 = arith.constant 0 : i32
    %c0_i32_0 = arith.constant 0 : i32
    return %arg0, %c0_i32 : i32, i32
  }
  func.func @transform_1(%arg0: i32) -> (i32, i32) {
    %c0_i32 = arith.constant 0 : i32
    %c0_i32_0 = arith.constant 0 : i32
    return %arg0, %c0_i32 : i32, i32
  }
  func.func @transform_2(%arg0: i32) -> (i32, i32) {
    %c0_i32 = arith.constant 0 : i32
    %c0_i32_0 = arith.constant 0 : i32
    return %arg0, %c0_i32 : i32, i32
  }
}

</mosaic_0001>

<llo_original>
// kernel: tpu_custom_call.1
$region0: #{tpu_custom_call.1}
  #allocation0 [shape = 'u32[]', space=smem, size = 0x4, offset = 0x4, fixed_abs, tag = 'smem constant byte address 0x4 - core index']
  #allocation1 [shape = 'u32[144,128]{1,0:T(1,128)}', space=vmem, size = 0x12000, scoped, tag = 'internal scratch']
  %s0 = inlined_call_operand.hbm [shape: f32[16,32], index: 0, kind: input, shape index: {}]
  %s1 = inlined_call_operand.hbm [shape: f32[16,32], index: 1, kind: input, shape index: {}]
  %s2 = inlined_call_operand.vmem [shape: f32[16,1], index: 2, kind: output, shape index: {}]
  %s3 = sld [smem:[#allocation0]]
  $region26: #{tpu_custom_call.1} parent=0
    _
  %s5 = ssub.s32 1, %s3
  %s6 = scalar_select 0, %s5, %s3
  $region1: #{tpu_custom_call.1} parent=0
    #allocation2 [shape = 'u8[8192]{0}', space=vmem, size = 0x2000, scoped, tag = 'input window, operand 0, single buffered']
    #allocation3 [shape = 's32[1]{0}', space=sflag, size = 0x4, scoped, tag = 'scoped memory for tpu_custom_call.1']
    #allocation4 [shape = 'u8[8192]{0}', space=vmem, size = 0x2000, scoped, tag = 'input window, operand 1, single buffered']
    #allocation5 [shape = 's32[1]{0}', space=sflag, size = 0x4, scoped, tag = 'scoped memory for tpu_custom_call.1']
    %7 = vsyncpa [#allocation3], 0
    %8 = vsyncpa [#allocation5], 0
    // Predicated region
    $region2: #{tpu_custom_call.1} parent=1 // pred_check
      _
    $region3: #{tpu_custom_call.1} parent=1 // pred_check_branch
      %10 = sbr.rel (0) target = $region5
    $region4: #{tpu_custom_call.1} parent=1 // pred_region
      %s12 = ssub.s32 256, 256
      %13 = vsyncadd [#allocation3], %s12
      %s14 = sshll.u32 [#allocation2], 4
      %s15 = int_to_ptr.vmem [resolvable:$true] %s14
      %20 = dma.hbm_to_vmem [thread:$0]  %s0, 256, %s15, [#allocation3], 128, 128, 8
    $region5: #{tpu_custom_call.1} parent=1 // pred_fallthru
      _
    // Predicated region
    $region6: #{tpu_custom_call.1} parent=1 // pred_check
      _
    $region7: #{tpu_custom_call.1} parent=1 // pred_check_branch
      %22 = sbr.rel (0) target = $region9
    $region8: #{tpu_custom_call.1} parent=1 // pred_region
      %s24 = ssub.s32 256, 256
      %25 = vsyncadd [#allocation5], %s24
      %s26 = sshll.u32 [#allocation4], 4
      %s27 = int_to_ptr.vmem [resolvable:$true] %s26
      %32 = dma.hbm_to_vmem [thread:$0]  %s1, 256, %s27, [#allocation5], 128, 128, 8
    $region9: #{tpu_custom_call.1} parent=1 // pred_fallthru
      _
    // Predicated region
    $region10: #{tpu_custom_call.1} parent=1 // pred_check
      _
    $region11: #{tpu_custom_call.1} parent=1 // pred_check_branch
      %34 = sbr.rel (0) target = $region13
    $region12: #{tpu_custom_call.1} parent=1 // pred_region
      %35 = dma.done [#allocation3], 256
    $region13: #{tpu_custom_call.1} parent=1 // pred_fallthru
      _
    // Predicated region
    $region14: #{tpu_custom_call.1} parent=1 // pred_check
      _
    $region15: #{tpu_custom_call.1} parent=1 // pred_check_branch
      %37 = sbr.rel (0) target = $region17
    $region16: #{tpu_custom_call.1} parent=1 // pred_region
      %38 = dma.done [#allocation5], 256
    $region17: #{tpu_custom_call.1} parent=1 // pred_fallthru
      _
    %v39 = vld [vmem:[#allocation2] sm:$0xff]
    %v40 = vld [vmem:[#allocation2 + $0x8] sm:$0xff]
    %v41 = vld [vmem:[#allocation4] sm:$0xff]
    %v42 = vld [vmem:[#allocation4 + $0x8] sm:$0xff]
    %vm43 = vcmask 261120
    %v44 = vsel %vm43, %v39, -inf
    %45 = vmax.xlane.f32.xlu0 %v44
    %v46 = vpop.xlane.xlu0 %45
    %v47 = vsel %vm43, %v40, -inf
    %48 = vmax.xlane.f32.xlu0 %v47
    %v49 = vpop.xlane.xlu0 %48
    %v50 = vsub.f32 %v39, %v46
    %v51 = vsub.f32 %v40, %v49
    %v52 = vmul.f32 %v50, 1.442695
    %v53 = vpow.pop %v52
    %v54 = vmul.f32 %v51, 1.442695
    %v55 = vpow.pop %v54
    %v56 = vsel %vm43, %v53, 0.0
    %57 = vadd.xlane.f32.xlu0 %v56
    %v58 = vpop.xlane.xlu0 %57
    %v59 = vsel %vm43, %v55, 0.0
    %60 = vadd.xlane.f32.xlu0 %v59
    %v61 = vpop.xlane.xlu0 %60
    %v62 = vlog2.pop %v58
    %v63 = vmul.f32 %v62, 0.6931472
    %v64 = vlog2.pop %v61
    %v65 = vmul.f32 %v64, 0.6931472
    %v66 = vadd.f32 %v46, %v63
    %v67 = vadd.f32 %v49, %v65
    %v68 = vsel %vm43, %v41, 0.0
    %69 = vadd.xlane.f32.xlu0 %v68
    %v70 = vpop.xlane.xlu0 %69
    %v71 = vsel %vm43, %v42, 0.0
    %72 = vadd.xlane.f32.xlu0 %v71
    %v73 = vpop.xlane.xlu0 %72
    %v74 = vmul.f32 %v70, %v66
    %v75 = vmul.f32 %v73, %v67
    %v76 = vmul.f32 %v39, %v41
    %v77 = vmul.f32 %v40, %v42
    %v78 = vsel %vm43, %v76, 0.0
    %79 = vadd.xlane.f32.xlu0 %v78
    %v80 = vpop.xlane.xlu0 %79
    %v81 = vsel %vm43, %v77, 0.0
    %82 = vadd.xlane.f32.xlu0 %v81
    %v83 = vpop.xlane.xlu0 %82
    %v84 = vsub.f32 %v74, %v80
    %v85 = vsub.f32 %v75, %v83
    %vm86 = vcmask 7168
    %87 = vst.msk [vmem:[%s2] sm:$0xff] %vm86, %v84
    %88 = vst.msk [vmem:[%s2 + $0x8] sm:$0xff] %vm86, %v85
    // Predicated region
    $region18: #{tpu_custom_call.1} parent=1 // pred_check
      _
    $region19: #{tpu_custom_call.1} parent=1 // pred_check_branch
      %90 = sbr.rel (0) target = $region21
    $region20: #{tpu_custom_call.1} parent=1 // pred_region
      _
    $region21: #{tpu_custom_call.1} parent=1 // pred_fallthru
      _
    // Predicated region
    $region22: #{tpu_custom_call.1} parent=1 // pred_check
      _
    $region23: #{tpu_custom_call.1} parent=1 // pred_check_branch
      %92 = sbr.rel (0) target = $region25
    $region24: #{tpu_custom_call.1} parent=1 // pred_region
      _
    $region25: #{tpu_custom_call.1} parent=1 // pred_fallthru
      _
    %93 = vsyncpa [#allocation3], 1
    %94 = vsyncpa [#allocation5], 1

</llo_original>
